<compile_context>
chip_gen: v7x
topology: tpu7x:2x2x1
jax: 0.10.0
libtpu: 0.0.40
codegen_flags: <defaults>
</compile_context>

<pallas_src>
import functools

import jax
import jax.numpy as jnp
from jax import lax
from jax.experimental import pallas as pl
from jax.experimental.pallas import tpu as pltpu

_LANE = 128                        # lanes per vreg
_MAX_BLOCK_ROWS = 4096             # 4096 x 128 x 4B = 2 MiB f32 per input block
_INPUT_VMEM_BUDGET = 12 * 1024 * 1024   # double-buffered input bytes allowed
_VMEM_LIMIT_BYTES = 32 * 1024 * 1024    # safe on v5e/v6e/v7x, > v5e 16 MiB default
_NUM_SPLITS = 2                    # leading "parallel" axis (2 TCs on v7x)


def _sublane_multiple(dtype) -> int:
    # f32 -> 8, bf16/f16 -> 16, int8/bool -> 32 (sublane packing/tiling rule)
    itemsize = jnp.dtype(dtype).itemsize
    return max(8, 32 // max(1, itemsize))


def _ps_dice_kernel(pred_ref, label_ref, inter_out_ref, sum_out_ref,
                    inter_acc, sum_acc, *,
                    block_rows, total_rows, blocks_per_split, needs_mask):
    c = pl.program_id(0)   # core-split index ("parallel")
    i = pl.program_id(1)   # reduction step within this split ("arbitrary")

    @pl.when(i == 0)
    def _init():
        inter_acc[...] = jnp.zeros_like(inter_acc)
        sum_acc[...] = jnp.zeros_like(sum_acc)

    p_raw = pred_ref[...]
    l_raw = label_ref[...]

    def terms():
        p = p_raw.astype(jnp.float32)
        if l_raw.dtype == jnp.bool_:
            # select instead of int->f32 convert + multiply (exact for 0/1 masks)
            prod = jnp.where(l_raw, p, 0.0)
            s = p + jnp.where(l_raw, 1.0, 0.0)
        else:
            l = l_raw.astype(jnp.float32)
            prod = p * l
            s = p + l
        return prod, s

    def accumulate(prod, s):
        # Leading-axis sum is pure VPU vreg adds; accumulators stay one vreg.
        inter_acc[...] += prod.reshape(-1, 8, _LANE).sum(axis=0)
        sum_acc[...] += s.reshape(-1, 8, _LANE).sum(axis=0)

    if needs_mask:
        # Logical (unclamped) block start; the index_map clamps the DMA so the
        # copy stays in bounds while this mask zeroes any overshoot rows.
        block_start = (c * blocks_per_split + i) * block_rows
        is_partial = block_start + block_rows > total_rows

        @pl.when(jnp.logical_not(is_partial))
        def _full():
            prod, s = terms()
            accumulate(prod, s)

        @pl.when(is_partial)
        def _partial():
            prod, s = terms()
            row = lax.broadcasted_iota(jnp.int32, (block_rows, _LANE), 0)
            valid = (block_start + row) < total_rows
            accumulate(jnp.where(valid, prod, 0.0), jnp.where(valid, s, 0.0))
    else:
        prod, s = terms()
        accumulate(prod, s)

    @pl.when(i == pl.num_programs(1) - 1)
    def _finalize():
        inter_out_ref[0] = inter_acc[...]
        sum_out_ref[0] = sum_acc[...]


def ps_dice_loss(pred_y, label_y, *, smooth=1.0, threshold=0.5):
    """Pallas implementation of PSDiceLoss.forward. Returns a scalar f32."""
    del threshold  # stored by the module __init__, unused in forward

    pred_f = pred_y.reshape(-1)
    label_f = label_y.reshape(-1)
    n = pred_f.shape[0]

    # Minimal padding: only to the next multiple of 128 lanes (often pad == 0).
    rows = -(-n // _LANE)
    pad = rows * _LANE - n
    if pad:
        pred_f = jnp.pad(pred_f, (0, pad))     # zeros / False are sum-neutral
        label_f = jnp.pad(label_f, (0, pad))
    pred2d = pred_f.reshape(rows, _LANE)
    label2d = label_f.reshape(rows, _LANE)

    # Block row count: as large as the input-VMEM budget allows (amortize the
    # ~0.35 us per-step overhead), aligned to the sublane tiling of the
    # narrowest input dtype, clamped for small inputs.
    sub = max(_sublane_multiple(pred2d.dtype), _sublane_multiple(label2d.dtype))
    item_bytes = (jnp.dtype(pred2d.dtype).itemsize
                  + jnp.dtype(label2d.dtype).itemsize)
    buf_bytes_per_row = 2 * _LANE * item_bytes           # x2 for double-buffering
    budget_rows = max(sub, _INPUT_VMEM_BUDGET // buf_bytes_per_row)
    block_rows = min(_MAX_BLOCK_ROWS, budget_rows)
    block_rows = max(sub, (block_rows // sub) * sub)
    block_rows = min(block_rows, -(-rows // sub) * sub)  # small-input clamp
    grid_n = -(-rows // block_rows)

    # 2-way split of the row blocks across the leading "parallel" axis.
    blocks_per_split = -(-grid_n // _NUM_SPLITS)
    last_block = grid_n - 1
    # Mask is needed if the last block overshoots `rows` or a split overshoots
    # the block range (its extra steps are clamped to the last block and fully
    # masked to zero).
    needs_mask = (rows % block_rows != 0) or (_NUM_SPLITS * blocks_per_split != grid_n)

    def in_index_map(c, i):
        return (jnp.minimum(c * blocks_per_split + i, last_block), 0)

    kernel = functools.partial(
        _ps_dice_kernel,
        block_rows=block_rows,
        total_rows=rows,
        blocks_per_split=blocks_per_split,
        needs_mask=needs_mask,
    )

    inter_partials, sum_partials = pl.pallas_call(
        kernel,
        out_shape=(
            jax.ShapeDtypeStruct((_NUM_SPLITS, 8, _LANE), jnp.float32),
            jax.ShapeDtypeStruct((_NUM_SPLITS, 8, _LANE), jnp.float32),
        ),
        grid_spec=pltpu.PrefetchScalarGridSpec(
            num_scalar_prefetch=0,
            grid=(_NUM_SPLITS, blocks_per_split),
            in_specs=[
                pl.BlockSpec((block_rows, _LANE), in_index_map),
                pl.BlockSpec((block_rows, _LANE), in_index_map),
            ],
            out_specs=(
                pl.BlockSpec((1, 8, _LANE), lambda c, i: (c, 0, 0)),
                pl.BlockSpec((1, 8, _LANE), lambda c, i: (c, 0, 0)),
            ),
            scratch_shapes=[
                pltpu.VMEM((8, _LANE), jnp.float32),   # sum(pred*label) partials
                pltpu.VMEM((8, _LANE), jnp.float32),   # sum(pred)+sum(label) partials
            ],
        ),
        compiler_params=pltpu.CompilerParams(
            dimension_semantics=("parallel", "arbitrary"),
            vmem_limit_bytes=_VMEM_LIMIT_BYTES,
        ),
    )(pred2d, label2d)

    # Combine the per-core partials in the wrapper; smooth is added exactly once.
    inter = jnp.sum(inter_partials)
    total = jnp.sum(sum_partials)
    return 1.0 - (2.0 * inter + smooth) / (total + smooth)


def _reference(pred_y, label_y, smooth):
    label_y = label_y.astype(jnp.float32)
    pred_y = pred_y.astype(jnp.float32)
    inter = jnp.sum(pred_y * label_y)
    return 1.0 - (2.0 * inter + smooth) / (jnp.sum(pred_y) + jnp.sum(label_y) + smooth)


if __name__ == "__main__":
    key = jax.random.PRNGKey(0)
    k1, k2, k3, k4 = jax.random.split(key, 4)
    smooth = 1.0

    # Test 1: NCHW segmentation-style shapes, lane-divisible, int labels.
    B, C, H, W = 2, 4, 16, 16
    pred1 = jax.random.uniform(k1, (B, C, H, W), dtype=jnp.float32)          # "probabilities"
    label1 = (jax.random.uniform(k2, (B, C, H, W)) > 0.5).astype(jnp.int32)  # binary mask
    loss1 = jax.block_until_ready(ps_dice_loss(pred1, label1, smooth=smooth, threshold=0.5))
    ref1 = _reference(pred1, label1, smooth)
    assert jnp.allclose(loss1, ref1, rtol=1e-5, atol=1e-5), (loss1, ref1)

    # Test 2: odd spatial size (exercises lane padding + gated partial-block
    # mask) with boolean labels (exercises the select fast path).
    B2, C2, H2, W2 = 2, 1, 15, 17
    pred2 = jax.random.uniform(k3, (B2, C2, H2, W2), dtype=jnp.float32)
    label2 = jax.random.uniform(k4, (B2, C2, H2, W2)) > 0.5
    loss2 = jax.block_until_ready(ps_dice_loss(pred2, label2, smooth=smooth, threshold=0.5))
    ref2 = _reference(pred2, label2, smooth)
    assert jnp.allclose(loss2, ref2, rtol=1e-5, atol=1e-5), (loss2, ref2)

    print("KERNEL_OK")
</pallas_src>

<mosaic_0001>
module attributes {stable_mosaic.version = 11 : i64} {
  func.func @_ps_dice_kernel(%arg0: i32, %arg1: i32, %arg2: memref<16x128xf32, #tpu.memory_space<vmem>>, %arg3: memref<16x128xi32, #tpu.memory_space<vmem>>, %arg4: memref<1x8x128xf32, #tpu.memory_space<vmem>>, %arg5: memref<1x8x128xf32, #tpu.memory_space<vmem>>, %arg6: memref<8x128xf32, #tpu.memory_space<vmem>>, %arg7: memref<8x128xf32, #tpu.memory_space<vmem>>) attributes {dimension_semantics = [#tpu.dimension_semantics<parallel>, #tpu.dimension_semantics<arbitrary>], iteration_bounds = array<i64: 2, 1>, scalar_prefetch = 0 : i64, scratch_operands = 2 : i64, tpu.core_type = #tpu.core_type<tc>, window_params = [{transform_indices = @transform_0, window_bounds = array<i64: 16, 128>}, {transform_indices = @transform_1, window_bounds = array<i64: 16, 128>}, {transform_indices = @transform_2, window_bounds = array<i64: 1, 8, 128>}, {transform_indices = @transform_3, window_bounds = array<i64: 1, 8, 128>}]} {
    %c0_i32 = arith.constant 0 : i32
    %0 = arith.cmpi eq, %arg1, %c0_i32 : i32
    %1 = arith.extui %0 : i1 to i32
    %c0_i32_0 = arith.constant 0 : i32
    %2 = arith.cmpi ne, %1, %c0_i32_0 : i32
    scf.if %2 {
      %cst = arith.constant 0.000000e+00 : f32
      %18 = vector.broadcast %cst : f32 to vector<8x128xf32>
      %c0_10 = arith.constant 0 : index
      %c0_11 = arith.constant 0 : index
      %19 = vector.load %arg6[%c0_10, %c0_11] : memref<8x128xf32, #tpu.memory_space<vmem>>, vector<8x128xf32>
      tpu.vector_store %arg6[%c0_10, %c0_11], %18 {strides = array<i32>} : memref<8x128xf32, #tpu.memory_space<vmem>>, vector<8x128xf32>,
      %cst_12 = arith.constant 0.000000e+00 : f32
      %20 = vector.broadcast %cst_12 : f32 to vector<8x128xf32>
      %c0_13 = arith.constant 0 : index
      %c0_14 = arith.constant 0 : index
      %21 = vector.load %arg7[%c0_13, %c0_14] : memref<8x128xf32, #tpu.memory_space<vmem>>, vector<8x128xf32>
      tpu.vector_store %arg7[%c0_13, %c0_14], %20 {strides = array<i32>} : memref<8x128xf32, #tpu.memory_space<vmem>>, vector<8x128xf32>,
    } else {
    }
    %c0 = arith.constant 0 : index
    %c0_1 = arith.constant 0 : index
    %3 = vector.load %arg2[%c0, %c0_1] : memref<16x128xf32, #tpu.memory_space<vmem>>, vector<16x128xf32>
    %c0_2 = arith.constant 0 : index
    %c0_3 = arith.constant 0 : index
    %4 = vector.load %arg3[%c0_2, %c0_3] : memref<16x128xi32, #tpu.memory_space<vmem>>, vector<16x128xi32>
    %c1_i32 = arith.constant 1 : i32
    %5 = arith.muli %arg0, %c1_i32 : i32
    %6 = arith.addi %5, %arg1 : i32
    %c16_i32 = arith.constant 16 : i32
    %7 = arith.muli %6, %c16_i32 : i32
    %c16_i32_4 = arith.constant 16 : i32
    %8 = arith.addi %7, %c16_i32_4 : i32
    %c16_i32_5 = arith.constant 16 : i32
    %9 = arith.cmpi sgt, %8, %c16_i32_5 : i32
    %true = arith.constant true
    %10 = arith.xori %9, %true : i1
    %11 = arith.extui %10 : i1 to i32
    %c0_i32_6 = arith.constant 0 : i32
    %12 = arith.cmpi ne, %11, %c0_i32_6 : i32
    scf.if %12 {
      %18 = arith.sitofp %4 : vector<16x128xi32> to vector<16x128xf32>
      %19 = arith.mulf %3, %18 : vector<16x128xf32>
      %20 = arith.addf %3, %18 : vector<16x128xf32>
      %c0_10 = arith.constant 0 : index
      %c0_11 = arith.constant 0 : index
      %21 = vector.load %arg6[%c0_10, %c0_11] : memref<8x128xf32, #tpu.memory_space<vmem>>, vector<8x128xf32>
      %22 = vector.shape_cast %19 : vector<16x128xf32> to vector<2x8x128xf32>
      %cst = arith.constant dense<0.000000e+00> : vector<8x128xf32>
      %23 = vector.multi_reduction <add>, %22, %cst [0] : vector<2x8x128xf32> to vector<8x128xf32>
      %24 = arith.addf %21, %23 : vector<8x128xf32>
      %c0_12 = arith.constant 0 : index
      %c0_13 = arith.constant 0 : index
      %25 = vector.load %arg6[%c0_12, %c0_13] : memref<8x128xf32, #tpu.memory_space<vmem>>, vector<8x128xf32>
      tpu.vector_store %arg6[%c0_12, %c0_13], %24 {strides = array<i32>} : memref<8x128xf32, #tpu.memory_space<vmem>>, vector<8x128xf32>,
      %c0_14 = arith.constant 0 : index
      %c0_15 = arith.constant 0 : index
      %26 = vector.load %arg7[%c0_14, %c0_15] : memref<8x128xf32, #tpu.memory_space<vmem>>, vector<8x128xf32>
      %27 = vector.shape_cast %20 : vector<16x128xf32> to vector<2x8x128xf32>
      %cst_16 = arith.constant dense<0.000000e+00> : vector<8x128xf32>
      %28 = vector.multi_reduction <add>, %27, %cst_16 [0] : vector<2x8x128xf32> to vector<8x128xf32>
      %29 = arith.addf %26, %28 : vector<8x128xf32>
      %c0_17 = arith.constant 0 : index
      %c0_18 = arith.constant 0 : index
      %30 = vector.load %arg7[%c0_17, %c0_18] : memref<8x128xf32, #tpu.memory_space<vmem>>, vector<8x128xf32>
      tpu.vector_store %arg7[%c0_17, %c0_18], %29 {strides = array<i32>} : memref<8x128xf32, #tpu.memory_space<vmem>>, vector<8x128xf32>,
    } else {
    }
    %13 = arith.extui %9 : i1 to i32
    %c0_i32_7 = arith.constant 0 : i32
    %14 = arith.cmpi ne, %13, %c0_i32_7 : i32
    scf.if %14 {
      %18 = arith.sitofp %4 : vector<16x128xi32> to vector<16x128xf32>
      %19 = arith.mulf %3, %18 : vector<16x128xf32>
      %20 = arith.addf %3, %18 : vector<16x128xf32>
      %21 = tpu.iota {dimensions = array<i32: 0>} : vector<16x128xi32>
      %22 = vector.broadcast %7 : i32 to vector<16x128xi32>
      %23 = arith.addi %22, %21 : vector<16x128xi32>
      %c16_i32_10 = arith.constant 16 : i32
      %24 = vector.broadcast %c16_i32_10 : i32 to vector<16x128xi32>
      %25 = arith.cmpi slt, %23, %24 : vector<16x128xi32>
      %cst = arith.constant 0.000000e+00 : f32
      %26 = vector.broadcast %cst : f32 to vector<16x128xf32>
      %27 = arith.select %25, %19, %26 : vector<16x128xi1>, vector<16x128xf32>
      %cst_11 = arith.constant 0.000000e+00 : f32
      %28 = vector.broadcast %cst_11 : f32 to vector<16x128xf32>
      %29 = arith.select %25, %20, %28 : vector<16x128xi1>, vector<16x128xf32>
      %c0_12 = arith.constant 0 : index
      %c0_13 = arith.constant 0 : index
      %30 = vector.load %arg6[%c0_12, %c0_13] : memref<8x128xf32, #tpu.memory_space<vmem>>, vector<8x128xf32>
      %31 = vector.shape_cast %27 : vector<16x128xf32> to vector<2x8x128xf32>
      %cst_14 = arith.constant dense<0.000000e+00> : vector<8x128xf32>
      %32 = vector.multi_reduction <add>, %31, %cst_14 [0] : vector<2x8x128xf32> to vector<8x128xf32>
      %33 = arith.addf %30, %32 : vector<8x128xf32>
      %c0_15 = arith.constant 0 : index
      %c0_16 = arith.constant 0 : index
      %34 = vector.load %arg6[%c0_15, %c0_16] : memref<8x128xf32, #tpu.memory_space<vmem>>, vector<8x128xf32>
      tpu.vector_store %arg6[%c0_15, %c0_16], %33 {strides = array<i32>} : memref<8x128xf32, #tpu.memory_space<vmem>>, vector<8x128xf32>,
      %c0_17 = arith.constant 0 : index
      %c0_18 = arith.constant 0 : index
      %35 = vector.load %arg7[%c0_17, %c0_18] : memref<8x128xf32, #tpu.memory_space<vmem>>, vector<8x128xf32>
      %36 = vector.shape_cast %29 : vector<16x128xf32> to vector<2x8x128xf32>
      %cst_19 = arith.constant dense<0.000000e+00> : vector<8x128xf32>
      %37 = vector.multi_reduction <add>, %36, %cst_19 [0] : vector<2x8x128xf32> to vector<8x128xf32>
      %38 = arith.addf %35, %37 : vector<8x128xf32>
      %c0_20 = arith.constant 0 : index
      %c0_21 = arith.constant 0 : index
      %39 = vector.load %arg7[%c0_20, %c0_21] : memref<8x128xf32, #tpu.memory_space<vmem>>, vector<8x128xf32>
      tpu.vector_store %arg7[%c0_20, %c0_21], %38 {strides = array<i32>} : memref<8x128xf32, #tpu.memory_space<vmem>>, vector<8x128xf32>,
    } else {
    }
    %c0_i32_8 = arith.constant 0 : i32
    %15 = arith.cmpi eq, %arg1, %c0_i32_8 : i32
    %16 = arith.extui %15 : i1 to i32
    %c0_i32_9 = arith.constant 0 : i32
    %17 = arith.cmpi ne, %16, %c0_i32_9 : i32
    scf.if %17 {
      %c0_10 = arith.constant 0 : index
      %c0_11 = arith.constant 0 : index
      %18 = vector.load %arg6[%c0_10, %c0_11] : memref<8x128xf32, #tpu.memory_space<vmem>>, vector<8x128xf32>
      %c0_12 = arith.constant 0 : index
      %c0_13 = arith.constant 0 : index
      %c0_14 = arith.constant 0 : index
      %19 = vector.load %arg4[%c0_12, %c0_13, %c0_14] : memref<1x8x128xf32, #tpu.memory_space<vmem>>, vector<1x8x128xf32>
      %20 = vector.shape_cast %19 : vector<1x8x128xf32> to vector<8x128xf32>
      %21 = vector.shape_cast %18 : vector<8x128xf32> to vector<1x8x128xf32>
      tpu.vector_store %arg4[%c0_12, %c0_13, %c0_14], %21 {strides = array<i32>} : memref<1x8x128xf32, #tpu.memory_space<vmem>>, vector<1x8x128xf32>,
      %c0_15 = arith.constant 0 : index
      %c0_16 = arith.constant 0 : index
      %22 = vector.load %arg7[%c0_15, %c0_16] : memref<8x128xf32, #tpu.memory_space<vmem>>, vector<8x128xf32>
      %c0_17 = arith.constant 0 : index
      %c0_18 = arith.constant 0 : index
      %c0_19 = arith.constant 0 : index
      %23 = vector.load %arg5[%c0_17, %c0_18, %c0_19] : memref<1x8x128xf32, #tpu.memory_space<vmem>>, vector<1x8x128xf32>
      %24 = vector.shape_cast %23 : vector<1x8x128xf32> to vector<8x128xf32>
      %25 = vector.shape_cast %22 : vector<8x128xf32> to vector<1x8x128xf32>
      tpu.vector_store %arg5[%c0_17, %c0_18, %c0_19], %25 {strides = array<i32>} : memref<1x8x128xf32, #tpu.memory_space<vmem>>, vector<1x8x128xf32>,
    } else {
    }
    return
  }
  func.func @transform_0(%arg0: i32, %arg1: i32) -> (i32, i32) {
    %c1_i32 = arith.constant 1 : i32
    %0 = arith.muli %arg0, %c1_i32 : i32
    %1 = arith.addi %0, %arg1 : i32
    %c0_i32 = arith.constant 0 : i32
    %2 = arith.minsi %1, %c0_i32 : i32
    %c0_i32_0 = arith.constant 0 : i32
    %c0_i32_1 = arith.constant 0 : i32
    return %2, %c0_i32_0 : i32, i32
  }
  func.func @transform_1(%arg0: i32, %arg1: i32) -> (i32, i32) {
    %c1_i32 = arith.constant 1 : i32
    %0 = arith.muli %arg0, %c1_i32 : i32
    %1 = arith.addi %0, %arg1 : i32
    %c0_i32 = arith.constant 0 : i32
    %2 = arith.minsi %1, %c0_i32 : i32
    %c0_i32_0 = arith.constant 0 : i32
    %c0_i32_1 = arith.constant 0 : i32
    return %2, %c0_i32_0 : i32, i32
  }
  func.func @transform_2(%arg0: i32, %arg1: i32) -> (i32, i32, i32) {
    %c0_i32 = arith.constant 0 : i32
    %c0_i32_0 = arith.constant 0 : i32
    %c0_i32_1 = arith.constant 0 : i32
    return %arg0, %c0_i32, %c0_i32_0 : i32, i32, i32
  }
  func.func @transform_3(%arg0: i32, %arg1: i32) -> (i32, i32, i32) {
    %c0_i32 = arith.constant 0 : i32
    %c0_i32_0 = arith.constant 0 : i32
    %c0_i32_1 = arith.constant 0 : i32
    return %arg0, %c0_i32, %c0_i32_0 : i32, i32, i32
  }
}

</mosaic_0001>

<llo_original>
// kernel: tpu_custom_call.1
$region0: #{tpu_custom_call.1}
  #allocation0 [shape = 'u32[]', space=smem, size = 0x4, offset = 0x4, fixed_abs, tag = 'smem constant byte address 0x4 - core index']
  #allocation1 [shape = 'u32[144,128]{1,0:T(1,128)}', space=vmem, size = 0x12000, scoped, tag = 'internal scratch']
  #allocation2 [shape = 'f32[8,128]{1,0:T(8,128)}', space=vmem, size = 0x1000, scoped, tag = 'scratch operand']
  #allocation3 [shape = 'f32[8,128]{1,0:T(8,128)}', space=vmem, size = 0x1000, scoped, tag = 'scratch operand']
  %s0 = inlined_call_operand.hbm [shape: f32[16,128], index: 0, kind: input, shape index: {}]
  %s1 = inlined_call_operand.hbm [shape: s32[16,128], index: 1, kind: input, shape index: {}]
  %s2 = inlined_call_operand.hbm [shape: f32[2,8,128], index: 2, kind: output, shape index: {0}]
  %s3 = inlined_call_operand.hbm [shape: f32[2,8,128], index: 3, kind: output, shape index: {1}]
  %4 = xla_tuple %s2, %s3
  %s5 = sld [smem:[#allocation0]]
  $region73: #{tpu_custom_call.1} parent=0
    _
  %s7 = ssub.s32 1, %s5
  %s8 = scalar_select 0, %s7, %s5
  $region1: #{tpu_custom_call.1} parent=0
    #allocation4 [shape = 'u8[16384]{0}', space=vmem, size = 0x4000, scoped, tag = 'input window, operand 0']
    #allocation5 [shape = 's32[2]{0}', space=sflag, size = 0x8, scoped, tag = 'scoped memory for tpu_custom_call.1']
    #allocation6 [shape = 's32[2]{0}', space=sflag, size = 0x8, scoped, tag = 'scoped memory for tpu_custom_call.1']
    #allocation7 [shape = 'u8[16384]{0}', space=vmem, size = 0x4000, scoped, tag = 'input window, operand 1']
    #allocation8 [shape = 's32[2]{0}', space=sflag, size = 0x8, scoped, tag = 'scoped memory for tpu_custom_call.1']
    #allocation9 [shape = 'u8[8192]{0}', space=vmem, size = 0x2000, scoped, tag = 'output window, operand 0']
    #allocation10 [shape = 'u8[8192]{0}', space=vmem, size = 0x2000, scoped, tag = 'output window, operand 1']
    #allocation11 [shape = 's32[2]{0}', space=sflag, size = 0x8, scoped, tag = 'scoped memory for tpu_custom_call.1']
    %9 = vsyncpa [#allocation5], 0
    %s10 = scalar_lea.sflag [#allocation5], 1
    %11 = vsyncpa %s10, 0
    %12 = vsyncpa [#allocation8], 0
    %s13 = scalar_lea.sflag [#allocation8], 1
    %14 = vsyncpa %s13, 0
    %15 = vsyncpa [#allocation6], 0
    %s16 = scalar_lea.sflag [#allocation6], 1
    %17 = vsyncpa %s16, 0
    %18 = vsyncpa [#allocation11], 0
    %s19 = scalar_lea.sflag [#allocation11], 1
    %20 = vsyncpa %s19, 0
    loop: start=0, step=1, limit=4
    $region2: #{tpu_custom_call.1} parent=1 // loop_pre_header
      _
    $region3: #{tpu_custom_call.1} parent=1 // loop_header
      %s22 = sphi 0, %s26
      %p23 = scmp.ge.s32.totalorder %s22, 4
      %s29 = sphi 0, %s41
      %s30 = sphi 0, %s37
      %s31 = sphi 0, %s29
      %s32 = sphi 0, %s30
      %s33 = sphi 0, %s31
      %s34 = sphi 0, %s32
      %s50 = sphi 0, %s52
      %s53 = sphi 0, %s50
      %s54 = sphi 0, %s53
      %s70 = sphi 0, %s54
      %s82 = sphi 0, %s84
      %s85 = sphi 0, %s82
      %s86 = sphi 0, %s85
      %s102 = sphi 0, %s86
      %s108 = sphi 0, %s110
      %s111 = sphi 0, %s108
      %s112 = sphi 0, %s111
      %s128 = sphi 0, %s112
      %s134 = sphi 0, %s136
      %s137 = sphi 0, %s134
      %s138 = sphi 0, %s137
      %s154 = sphi 0, %s138
    $region4: #{tpu_custom_call.1} parent=1 // loop_header_branch
      %25 = sbr.rel (%p23) target = $region8
    $region5: #{tpu_custom_call.1} parent=1 // loop_body
      %s27 = ssub.s32 %s22, 1
      %s28 = ssub.s32 %s22, 2
      %s35 = sadd.s32 1, %s30
      %p36 = scmp.ge.s32.totalorder %s35, 1
      %s37 = scalar_select %p36, 0, %s35
      %s38 = sadd.s32 1, %s29
      %s39 = scalar_select %p36, %s38, %s29
      %p40 = scmp.ge.s32.totalorder %s39, 2
      %s41 = scalar_select %p40, 0, %s39
      %s42 = sadd.s32 %s29, %s30
      %p43 = scmp.lt.s32.totalorder %s42, 0
      %s44 = scalar_select %p43, %s42, 0
      %s45 = sadd.s32 %s41, %s37
      %p46 = scmp.lt.s32.totalorder %s45, 0
      %s47 = scalar_select %p46, %s45, 0
      %s48 = ssub.s32 %s44, %s47
      %p49 = scmp.eq.s32.totalorder %s48, 0
      %s51 = sadd.s32 %s50, 1
      %s52 = scalar_select %p49, %s50, %s51
      %p55 = pneg %p49
      %p56 = scmp.eq.s32.totalorder %s22, 1
      %p57 = por %p55, %p56
      %p58 = scmp.ne.s32.totalorder %s50, %s53
      %p59 = scmp.eq.s32.totalorder %s22, 0
      %p60 = por %p58, %p59
      %p61 = scmp.ne.s32.totalorder %s50, %s53
      %p62 = scmp.eq.s32.totalorder %s27, 1
      %p63 = por %p61, %p62
      %p64 = scmp.ne.s32.totalorder %s53, %s54
      %p65 = scmp.eq.s32.totalorder %s27, 0
      %p66 = por %p64, %p65
      %p67 = scmp.ne.s32.totalorder %s53, %s54
      %p68 = scmp.eq.s32.totalorder %s28, 1
      %p69 = por %p67, %p68
      %p71 = scmp.ne.s32.totalorder %s54, %s70
      %p72 = scmp.eq.s32.totalorder %s28, 0
      %p73 = por %p71, %p72
      %s74 = sadd.s32 %s29, %s30
      %p75 = scmp.lt.s32.totalorder %s74, 0
      %s76 = scalar_select %p75, %s74, 0
      %s77 = sadd.s32 %s41, %s37
      %p78 = scmp.lt.s32.totalorder %s77, 0
      %s79 = scalar_select %p78, %s77, 0
      %s80 = ssub.s32 %s76, %s79
      %p81 = scmp.eq.s32.totalorder %s80, 0
      %s83 = sadd.s32 %s82, 1
      %s84 = scalar_select %p81, %s82, %s83
      %p87 = pneg %p81
      %p88 = scmp.eq.s32.totalorder %s22, 1
      %p89 = por %p87, %p88
      %p90 = scmp.ne.s32.totalorder %s82, %s85
      %p91 = scmp.eq.s32.totalorder %s22, 0
      %p92 = por %p90, %p91
      %p93 = scmp.ne.s32.totalorder %s82, %s85
      %p94 = scmp.eq.s32.totalorder %s27, 1
      %p95 = por %p93, %p94
      %p96 = scmp.ne.s32.totalorder %s85, %s86
      %p97 = scmp.eq.s32.totalorder %s27, 0
      %p98 = por %p96, %p97
      %p99 = scmp.ne.s32.totalorder %s85, %s86
      %p100 = scmp.eq.s32.totalorder %s28, 1
      %p101 = por %p99, %p100
      %p103 = scmp.ne.s32.totalorder %s86, %s102
      %p104 = scmp.eq.s32.totalorder %s28, 0
      %p105 = por %p103, %p104
      %s106 = ssub.s32 %s29, %s41
      %p107 = scmp.eq.s32.totalorder %s106, 0
      %s109 = sadd.s32 %s108, 1
      %s110 = scalar_select %p107, %s108, %s109
      %p113 = pneg %p107
      %p114 = scmp.eq.s32.totalorder %s22, 1
      %p115 = por %p113, %p114
      %p116 = scmp.ne.s32.totalorder %s108, %s111
      %p117 = scmp.eq.s32.totalorder %s22, 0
      %p118 = por %p116, %p117
      %p119 = scmp.ne.s32.totalorder %s108, %s111
      %p120 = scmp.eq.s32.totalorder %s27, 1
      %p121 = por %p119, %p120
      %p122 = scmp.ne.s32.totalorder %s111, %s112
      %p123 = scmp.eq.s32.totalorder %s27, 0
      %p124 = por %p122, %p123
      %p125 = scmp.ne.s32.totalorder %s111, %s112
      %p126 = scmp.eq.s32.totalorder %s28, 1
      %p127 = por %p125, %p126
      %p129 = scmp.ne.s32.totalorder %s112, %s128
      %p130 = scmp.eq.s32.totalorder %s28, 0
      %p131 = por %p129, %p130
      %s132 = ssub.s32 %s29, %s41
      %p133 = scmp.eq.s32.totalorder %s132, 0
      %s135 = sadd.s32 %s134, 1
      %s136 = scalar_select %p133, %s134, %s135
      %p139 = pneg %p133
      %p140 = scmp.eq.s32.totalorder %s22, 1
      %p141 = por %p139, %p140
      %p142 = scmp.ne.s32.totalorder %s134, %s137
      %p143 = scmp.eq.s32.totalorder %s22, 0
      %p144 = por %p142, %p143
      %p145 = scmp.ne.s32.totalorder %s134, %s137
      %p146 = scmp.eq.s32.totalorder %s27, 1
      %p147 = por %p145, %p146
      %p148 = scmp.ne.s32.totalorder %s137, %s138
      %p149 = scmp.eq.s32.totalorder %s27, 0
      %p150 = por %p148, %p149
      %p151 = scmp.ne.s32.totalorder %s137, %s138
      %p152 = scmp.eq.s32.totalorder %s28, 1
      %p153 = por %p151, %p152
      %p155 = scmp.ne.s32.totalorder %s138, %s154
      %p156 = scmp.eq.s32.totalorder %s28, 0
      %p157 = por %p155, %p156
      %p158 = scmp.le.s32.totalorder 1, %s22
      %p159 = scmp.lt.s32.totalorder %s22, 3
      %p160 = pnand %p158, %p159
      %p161 = pneg %p160
      // Predicated region
      $region9: #{tpu_custom_call.1} parent=5 // pred_check
        _
      $region10: #{tpu_custom_call.1} parent=5 // pred_check_branch
        %163 = sbr.rel (%p160) target = $region12
      $region11: #{tpu_custom_call.1} parent=5 // pred_region
        %s164 = ssub.s32 %s22, 1
      $region12: #{tpu_custom_call.1} parent=5 // pred_fallthru
        _
      %p165 = scmp.lt.s32.totalorder %s22, 2
      // Predicated region
      $region13: #{tpu_custom_call.1} parent=5 // pred_check
        %p166 = pneg %p165
      $region14: #{tpu_custom_call.1} parent=5 // pred_check_branch
        %168 = sbr.rel (%p166) target = $region16
      $region15: #{tpu_custom_call.1} parent=5 // pred_region
        // Predicated region
        $region17: #{tpu_custom_call.1} parent=15 // pred_check
          %p169 = pneg %p60
        $region18: #{tpu_custom_call.1} parent=15 // pred_check_branch
          %171 = sbr.rel (%p169) target = $region20
        $region19: #{tpu_custom_call.1} parent=15 // pred_region
          %s172 = sand.u32 %s50, 1
          %s173 = scalar_lea.sflag [#allocation5], %s172
          %s174 = sand.u32 %s50, 1
          %s175 = smul.addr %s174, 16
          %s176 = scalar_lea.vmem [#allocation4], %s175
          %s177 = sadd.s32 %s29, %s30
          %p178 = scmp.lt.s32.totalorder %s177, 0
          %s179 = scalar_select %p178, %s177, 0
          %s180 = smul.u32 2, %s179
          %s182 = ssub.s32 256, 256
          %183 = vsyncadd %s173, %s182
          %s184 = smul.addr %s180, 128
          %s185 = scalar_lea.hbm %s0, %s184
          %s186 = sshll.u32 %s176, 4
          %s187 = int_to_ptr.vmem [resolvable:$true] %s186
          %192 = dma.hbm_to_vmem [thread:$0]  %s185, 256, %s187, %s173, 128, 128, 8
        $region20: #{tpu_custom_call.1} parent=15 // pred_fallthru
          _
        // Predicated region
        $region21: #{tpu_custom_call.1} parent=15 // pred_check
          %p193 = pneg %p92
        $region22: #{tpu_custom_call.1} parent=15 // pred_check_branch
          %195 = sbr.rel (%p193) target = $region24
        $region23: #{tpu_custom_call.1} parent=15 // pred_region
          %s196 = sand.u32 %s82, 1
          %s197 = scalar_lea.sflag [#allocation8], %s196
          %s198 = sand.u32 %s82, 1
          %s199 = smul.addr %s198, 16
          %s200 = scalar_lea.vmem [#allocation7], %s199
          %s201 = sadd.s32 %s29, %s30
          %p202 = scmp.lt.s32.totalorder %s201, 0
          %s203 = scalar_select %p202, %s201, 0
          %s204 = smul.u32 2, %s203
          %s206 = ssub.s32 256, 256
          %207 = vsyncadd %s197, %s206
          %s208 = smul.addr %s204, 128
          %s209 = scalar_lea.hbm %s1, %s208
          %s210 = sshll.u32 %s200, 4
          %s211 = int_to_ptr.vmem [resolvable:$true] %s210
          %216 = dma.hbm_to_vmem [thread:$0]  %s209, 256, %s211, %s197, 128, 128, 8
        $region24: #{tpu_custom_call.1} parent=15 // pred_fallthru
          _
      $region16: #{tpu_custom_call.1} parent=5 // pred_fallthru
        _
      %p217 = scmp.le.s32.totalorder 1, %s22
      %p218 = scmp.lt.s32.totalorder %s22, 3
      %p219 = pnand %p217, %p218
      %p220 = pneg %p219
      // Predicated region
      $region25: #{tpu_custom_call.1} parent=5 // pred_check
        _
      $region26: #{tpu_custom_call.1} parent=5 // pred_check_branch
        %222 = sbr.rel (%p219) target = $region28
      $region27: #{tpu_custom_call.1} parent=5 // pred_region
        %s223 = ssub.s32 %s22, 1
        %s224 = sand.u32 %s53, 1
        %s225 = scalar_lea.sflag [#allocation5], %s224
        %s226 = sand.u32 %s53, 1
        %s227 = smul.addr %s226, 16
        %s228 = scalar_lea.vmem [#allocation4], %s227
        // Predicated region
        $region29: #{tpu_custom_call.1} parent=27 // pred_check
          %p229 = pneg %p66
        $region30: #{tpu_custom_call.1} parent=27 // pred_check_branch
          %231 = sbr.rel (%p229) target = $region32
        $region31: #{tpu_custom_call.1} parent=27 // pred_region
          %232 = dma.done %s225, 256
        $region32: #{tpu_custom_call.1} parent=27 // pred_fallthru
          _
        %s233 = sand.u32 %s85, 1
        %s234 = scalar_lea.sflag [#allocation8], %s233
        %s235 = sand.u32 %s85, 1
        %s236 = smul.addr %s235, 16
        %s237 = scalar_lea.vmem [#allocation7], %s236
        // Predicated region
        $region33: #{tpu_custom_call.1} parent=27 // pred_check
          %p238 = pneg %p98
        $region34: #{tpu_custom_call.1} parent=27 // pred_check_branch
          %240 = sbr.rel (%p238) target = $region36
        $region35: #{tpu_custom_call.1} parent=27 // pred_region
          %241 = dma.done %s234, 256
        $region36: #{tpu_custom_call.1} parent=27 // pred_fallthru
          _
        %s242 = sand.u32 %s53, 1
        %s243 = scalar_lea.sflag [#allocation5], %s242
        %s244 = sand.u32 %s53, 1
        %s245 = smul.addr %s244, 16
        %s246 = scalar_lea.vmem [#allocation4], %s245
        %p247 = pneg %p66
        %p248 = pneg %p63
        %s249 = sand.u32 %s85, 1
        %s250 = scalar_lea.sflag [#allocation8], %s249
        %s251 = sand.u32 %s85, 1
        %s252 = smul.addr %s251, 16
        %s253 = scalar_lea.vmem [#allocation7], %s252
        %p254 = pneg %p98
        %p255 = pneg %p95
        %p256 = pneg %p124
        %p257 = pneg %p121
        %s258 = sand.u32 %s111, 1
        %s259 = scalar_lea.sflag [#allocation6], %s258
        %s260 = sand.u32 %s111, 1
        %s261 = smul.addr %s260, 8
        %s262 = scalar_lea.vmem [#allocation9], %s261
        %p263 = pneg %p150
        %p264 = pneg %p147
        %s265 = sand.u32 %s137, 1
        %s266 = scalar_lea.sflag [#allocation11], %s265
        %s267 = sand.u32 %s137, 1
        %s268 = smul.addr %s267, 8
        %s269 = scalar_lea.vmem [#allocation10], %s268
        %s270 = sadd.s32 %s31, %s32
        %p271 = scmp.lt.s32.totalorder %s270, 0
        %s272 = scalar_select %p271, %s270, 0
        %s273 = smul.u32 2, %s272
        %s274 = sadd.s32 %s31, %s32
        %p275 = scmp.lt.s32.totalorder %s274, 0
        %s276 = scalar_select %p275, %s274, 0
        %s277 = smul.u32 2, %s276
        %p278 = scmp.eq.s32.totalorder %s32, 0
        // Predicated region
        $region37: #{tpu_custom_call.1} parent=27 // pred_check
          %p279 = pneg %p278
        $region38: #{tpu_custom_call.1} parent=27 // pred_check_branch
          %281 = sbr.rel (%p279) target = $region40
        $region39: #{tpu_custom_call.1} parent=27 // pred_region
          %282 = vst [vmem:[#allocation2] sm:$0xff] 0.0
          %283 = vst [vmem:[#allocation3] sm:$0xff] 0.0
        $region40: #{tpu_custom_call.1} parent=27 // pred_fallthru
          _
        %v284 = vld [vmem:[%s228] sm:$0xff]
        %v285 = vld [vmem:[%s228 + $0x8] sm:$0xff]
        %v286 = vld [vmem:[%s237] sm:$0xff]
        %v287 = vld [vmem:[%s237 + $0x8] sm:$0xff]
        %s288 = sadd.s32 %s31, %s32
        %s289 = smul.u32 %s288, 16
        %s290 = sadd.s32 %s289, 16
        %p291 = scmp.gt.s32.totalorder %s290, 16
        %p292 = scmp.le.s32.totalorder %s290, 16
        // Predicated region
        $region41: #{tpu_custom_call.1} parent=27 // pred_check
          %p293 = pneg %p292
        $region42: #{tpu_custom_call.1} parent=27 // pred_check_branch
          %295 = sbr.rel (%p293) target = $region44
        $region43: #{tpu_custom_call.1} parent=27 // pred_region
          %v296 = vcvt.s32.f32 %v286
          %v297 = vcvt.s32.f32 %v287
          %v298 = vmul.f32 %v284, %v296
          %v299 = vmul.f32 %v285, %v297
          %v300 = vadd.f32 %v284, %v296
          %v301 = vadd.f32 %v285, %v297
          %v302 = vld [vmem:[#allocation2] sm:$0xff]
          %v303 = vadd.f32 %v298, %v299
          %v304 = vadd.f32 %v302, %v303
          %305 = vst [vmem:[#allocation2] sm:$0xff] %v304
          %v306 = vld [vmem:[#allocation3] sm:$0xff]
          %v307 = vadd.f32 %v300, %v301
          %v308 = vadd.f32 %v306, %v307
          %309 = vst [vmem:[#allocation3] sm:$0xff] %v308
        $region44: #{tpu_custom_call.1} parent=27 // pred_fallthru
          _
        // Predicated region
        $region45: #{tpu_custom_call.1} parent=27 // pred_check
          %p310 = pneg %p291
        $region46: #{tpu_custom_call.1} parent=27 // pred_check_branch
          %312 = sbr.rel (%p310) target = $region48
        $region47: #{tpu_custom_call.1} parent=27 // pred_region
          %v313 = vcvt.s32.f32 %v286
          %v314 = vcvt.s32.f32 %v287
          %v315 = vmul.f32 %v284, %v313
          %v316 = vmul.f32 %v285, %v314
          %v317 = vadd.f32 %v284, %v313
          %v318 = vadd.f32 %v285, %v314
          %v319 = vlaneseq
          %v320 = vshrl.u32 %v319, 7
          %v321 = vadd.s32 %v320, 8
          %v322 = vstv %s289
          %v323 = vadd.s32 %v322, %v320
          %v324 = vadd.s32 %v322, %v321
          %vm325 = vcmp.lt.s32.totalorder %v323, 16
          %vm326 = vcmp.lt.s32.totalorder %v324, 16
          %v327 = vsel %vm325, %v315, 0.0
          %v328 = vsel %vm326, %v316, 0.0
          %v329 = vsel %vm325, %v317, 0.0
          %v330 = vsel %vm326, %v318, 0.0
          %v331 = vld [vmem:[#allocation2] sm:$0xff]
          %v332 = vadd.f32 %v327, %v328
          %v333 = vadd.f32 %v331, %v332
          %334 = vst [vmem:[#allocation2] sm:$0xff] %v333
          %v335 = vld [vmem:[#allocation3] sm:$0xff]
          %v336 = vadd.f32 %v329, %v330
          %v337 = vadd.f32 %v335, %v336
          %338 = vst [vmem:[#allocation3] sm:$0xff] %v337
        $region48: #{tpu_custom_call.1} parent=27 // pred_fallthru
          _
        // Predicated region
        $region49: #{tpu_custom_call.1} parent=27 // pred_check
          %p339 = pneg %p278
        $region50: #{tpu_custom_call.1} parent=27 // pred_check_branch
          %341 = sbr.rel (%p339) target = $region52
        $region51: #{tpu_custom_call.1} parent=27 // pred_region
          %v342 = vld [vmem:[#allocation2] sm:$0xff]
          %343 = vst [vmem:[%s262] sm:$0xff] %v342
          %v344 = vld [vmem:[#allocation3] sm:$0xff]
          %345 = vst [vmem:[%s269] sm:$0xff] %v344
        $region52: #{tpu_custom_call.1} parent=27 // pred_fallthru
          _
        %s346 = sand.u32 %s111, 1
        %s347 = scalar_lea.sflag [#allocation6], %s346
        %s348 = sand.u32 %s111, 1
        %s349 = smul.addr %s348, 8
        %s350 = scalar_lea.vmem [#allocation9], %s349
        %s351 = sand.u32 %s137, 1
        %s352 = scalar_lea.sflag [#allocation11], %s351
        %s353 = sand.u32 %s137, 1
        %s354 = smul.addr %s353, 8
        %s355 = scalar_lea.vmem [#allocation10], %s354
        // Predicated region
        $region53: #{tpu_custom_call.1} parent=27 // pred_check
          %p356 = pneg %p121
        $region54: #{tpu_custom_call.1} parent=27 // pred_check_branch
          %358 = sbr.rel (%p356) target = $region56
        $region55: #{tpu_custom_call.1} parent=27 // pred_region
          %s360 = ssub.s32 128, 128
          %361 = vsyncadd %s347, %s360
          %s362 = smul.addr %s31, 128
          %s363 = scalar_lea.hbm %s2, %s362
          %s365 = sshll.u32 %s350, 4
          %s366 = int_to_ptr.vmem [resolvable:$true] %s365
          %368 = dma.vmem_to_hbm [thread:$0]  %s366, 128, %s363, %s347
        $region56: #{tpu_custom_call.1} parent=27 // pred_fallthru
          _
        // Predicated region
        $region57: #{tpu_custom_call.1} parent=27 // pred_check
          %p369 = pneg %p147
        $region58: #{tpu_custom_call.1} parent=27 // pred_check_branch
          %371 = sbr.rel (%p369) target = $region60
        $region59: #{tpu_custom_call.1} parent=27 // pred_region
          %s373 = ssub.s32 128, 128
          %374 = vsyncadd %s352, %s373
          %s375 = smul.addr %s31, 128
          %s376 = scalar_lea.hbm %s3, %s375
          %s378 = sshll.u32 %s355, 4
          %s379 = int_to_ptr.vmem [resolvable:$true] %s378
          %381 = dma.vmem_to_hbm [thread:$0]  %s379, 128, %s376, %s352
        $region60: #{tpu_custom_call.1} parent=27 // pred_fallthru
          _
      $region28: #{tpu_custom_call.1} parent=5 // pred_fallthru
        _
      %p382 = scmp.le.s32.totalorder 2, %s22
      // Predicated region
      $region61: #{tpu_custom_call.1} parent=5 // pred_check
        %p383 = pneg %p382
      $region62: #{tpu_custom_call.1} parent=5 // pred_check_branch
        %385 = sbr.rel (%p383) target = $region64
      $region63: #{tpu_custom_call.1} parent=5 // pred_region
        %s386 = ssub.s32 %s22, 2
        // Predicated region
        $region65: #{tpu_custom_call.1} parent=63 // pred_check
          %p387 = pneg %p127
        $region66: #{tpu_custom_call.1} parent=63 // pred_check_branch
          %389 = sbr.rel (%p387) target = $region68
        $region67: #{tpu_custom_call.1} parent=63 // pred_region
          %s390 = sand.u32 %s112, 1
          %s391 = scalar_lea.sflag [#allocation6], %s390
          %s392 = sand.u32 %s112, 1
          %s393 = smul.addr %s392, 8
          %s394 = scalar_lea.vmem [#allocation9], %s393
          %395 = dma.done %s391, 128
        $region68: #{tpu_custom_call.1} parent=63 // pred_fallthru
          _
        // Predicated region
        $region69: #{tpu_custom_call.1} parent=63 // pred_check
          %p396 = pneg %p153
        $region70: #{tpu_custom_call.1} parent=63 // pred_check_branch
          %398 = sbr.rel (%p396) target = $region72
        $region71: #{tpu_custom_call.1} parent=63 // pred_region
          %s399 = sand.u32 %s138, 1
          %s400 = scalar_lea.sflag [#allocation11], %s399
          %s401 = sand.u32 %s138, 1
          %s402 = smul.addr %s401, 8
          %s403 = scalar_lea.vmem [#allocation10], %s402
          %404 = dma.done %s400, 128
        $region72: #{tpu_custom_call.1} parent=63 // pred_fallthru
          _
      $region64: #{tpu_custom_call.1} parent=5 // pred_fallthru
        _
    $region6: #{tpu_custom_call.1} parent=1 // loop_footer
      %s26 = sadd.s32 1, %s22
    $region7: #{tpu_custom_call.1} parent=1 // loop_footer_branch
      %21 = sbr.rel target = $region3
    $region8: #{tpu_custom_call.1} parent=1 // loop_exit
      _
    %405 = vsyncpa [#allocation5], 1
    %s406 = scalar_lea.sflag [#allocation5], 1
    %407 = vsyncpa %s406, 1
    %408 = vsyncpa [#allocation8], 1
    %s409 = scalar_lea.sflag [#allocation8], 1
    %410 = vsyncpa %s409, 1
    %411 = vsyncpa [#allocation6], 1
    %s412 = scalar_lea.sflag [#allocation6], 1
    %413 = vsyncpa %s412, 1
    %414 = vsyncpa [#allocation11], 1
    %s415 = scalar_lea.sflag [#allocation11], 1
    %416 = vsyncpa %s415, 1

</llo_original>
